<compile_context>
chip_gen: v7x
topology: tpu7x:2x2x1
jax: 0.10.0
libtpu: 0.0.40
codegen_flags: <defaults>
</compile_context>

<pallas_src>
import jax
import jax.numpy as jnp
from jax.experimental import pallas as pl
from jax.experimental.pallas import tpu as pltpu


def _round_up(v, m):
    return ((v + m - 1) // m) * m


def _vmem_capacity_bytes():
    """Per-core VMEM capacity; conservative fallback if the query is missing."""
    try:
        return int(pltpu.get_tpu_info().vmem_capacity_bytes)
    except Exception:
        return 64 * 1024 * 1024  # v7x per-TensorCore size (safe everywhere)


# --------------------------------------------------------------------------- #
# Fused single-kernel path (A resident in VMEM).
# --------------------------------------------------------------------------- #
def _fused_kernel(a_ref, x_ref, alpha_ref, z_ref):
    a = a_ref[...]                                     # (n, n) bf16
    x = x_ref[...]                                     # (n, d) f32 (exact "-x")
    # Y = A @ X, kept in f32 in VMEM (never written to HBM).
    y = jnp.dot(a, x.astype(jnp.bfloat16),
                preferred_element_type=jnp.float32)    # (n, d) f32
    ay = jnp.dot(a, y.astype(jnp.bfloat16),
                 preferred_element_type=jnp.float32)   # (n, d) f32
    alph = jax.nn.sigmoid(alpha_ref[...])              # (n, 1) f32 (EUP)
    z_ref[...] = (alph * ay - x).astype(z_ref.dtype)


def _fused_vmem_estimate(n_pad, d_pad):
    return (n_pad * n_pad * 2                 # A bf16
            + n_pad * d_pad * (4 + 2)         # X f32 + in-kernel bf16 cast
            + n_pad * d_pad * (4 + 2)         # Y f32 + bf16 cast for 2nd matmul
            + n_pad * d_pad * 4               # A@Y f32
            + n_pad * d_pad * 4               # output block f32
            + n_pad * 4)                      # alpha


# --------------------------------------------------------------------------- #
# Large-N fallback: two passes, A row panels, resident X / Y slab, no K axis.
# --------------------------------------------------------------------------- #
def _pass1_kernel(a_ref, x_ref, y_ref):
    # a_ref: (tm, n_pad) bf16 row panel; x_ref: full (n_pad, d_pad) f32 slab
    # (constant index_map -> loaded into VMEM once, resident across the grid).
    y_ref[...] = jnp.dot(a_ref[...], x_ref[...].astype(jnp.bfloat16),
                         preferred_element_type=jnp.float32).astype(y_ref.dtype)


def _pass2_kernel(a_ref, y_ref, alpha_ref, x_ref, z_ref):
    # a_ref: (tm, n_pad) bf16 row panel; y_ref: resident (n_pad, d_pad) bf16 slab.
    ay = jnp.dot(a_ref[...], y_ref[...], preferred_element_type=jnp.float32)
    alph = jax.nn.sigmoid(alpha_ref[...])              # (tm, 1)
    # Epilogue written directly into the output block (no acc scratch).
    z_ref[...] = (alph * ay - x_ref[...]).astype(z_ref.dtype)


def _pick_tm(n_pad, d_pad, budget):
    """Largest row-tile (512 preferred) whose working set fits the VMEM budget."""
    for tm in (512, 256, 128):
        if n_pad % tm:
            continue
        need = (2 * tm * n_pad * 2            # A row panel, double-buffered, bf16
                + 2 * n_pad * d_pad * 4       # resident slab (f32 bound)
                + 2 * tm * d_pad * 4          # output block, double-buffered
                + 2 * tm * d_pad * 4)         # x row block / headroom
        if need <= budget:
            return tm
    return 128


# --------------------------------------------------------------------------- #
# Host-side wrappers.
# --------------------------------------------------------------------------- #
def prepare_odefunc(adj, alpha, latent_dim):
    """One-time (per ODE solve) preparation: pad + cast A, pad + reshape alpha."""
    N = adj.shape[0]
    assert adj.shape == (N, N)
    n_pad = _round_up(N, 128)
    d_pad = _round_up(latent_dim, 128)
    a_bf16 = jnp.pad(adj, ((0, n_pad - N), (0, n_pad - N))).astype(jnp.bfloat16)
    alpha2d = jnp.pad(alpha, (0, n_pad - N)).reshape(n_pad, 1).astype(jnp.float32)
    return {"a": a_bf16, "alpha": alpha2d,
            "N": N, "D": int(latent_dim), "n_pad": n_pad, "d_pad": d_pad}


def odefunc_forward(prepared, x):
    """f = sigmoid(alpha)[:, None] * (A @ (A @ x)) - x."""
    N, D = prepared["N"], prepared["D"]
    n_pad, d_pad = prepared["n_pad"], prepared["d_pad"]
    a_bf16, alpha2d = prepared["a"], prepared["alpha"]
    assert x.shape == (N, D)
    out_dtype = x.dtype

    # Single padded f32 copy of x (exact "-x" term; bf16 cast happens in-kernel).
    if (n_pad, d_pad) != (N, D):
        x_p = jnp.pad(x, ((0, n_pad - N), (0, d_pad - D))).astype(jnp.float32)
    else:
        x_p = x.astype(jnp.float32)

    cap = _vmem_capacity_bytes()
    vmem_limit = int(cap * 0.9)
    budget = int(cap * 0.7)

    matmul_flops = 2 * n_pad * n_pad * d_pad
    a_bytes = n_pad * n_pad * 2

    # ---- Fused path: A resident in VMEM, Y never leaves VMEM ---------------
    if _fused_vmem_estimate(n_pad, d_pad) <= budget:
        z = pl.pallas_call(
            _fused_kernel,
            out_shape=jax.ShapeDtypeStruct((n_pad, d_pad), out_dtype),
            grid=(1,),
            in_specs=[
                pl.BlockSpec((n_pad, n_pad), lambda i: (0, 0)),   # A (whole)
                pl.BlockSpec((n_pad, d_pad), lambda i: (0, 0)),   # X (whole, f32)
                pl.BlockSpec((n_pad, 1), lambda i: (0, 0)),       # alpha column
            ],
            out_specs=pl.BlockSpec((n_pad, d_pad), lambda i: (0, 0)),
            compiler_params=pltpu.CompilerParams(
                dimension_semantics=("arbitrary",),
                vmem_limit_bytes=vmem_limit),
            cost_estimate=pl.CostEstimate(
                flops=2 * matmul_flops + 2 * n_pad * d_pad,
                transcendentals=n_pad,
                bytes_accessed=a_bytes + n_pad * d_pad * 4 + n_pad * 4
                + n_pad * d_pad * 4),
        )(a_bf16, x_p, alpha2d)
        return z[:N, :D]

    # ---- Fallback: two passes, A row panels, resident slabs -----------------
    tm = _pick_tm(n_pad, d_pad, budget)
    grid = (n_pad // tm,)
    cp = pltpu.CompilerParams(dimension_semantics=("parallel",),
                              vmem_limit_bytes=vmem_limit)
    # NOTE: if the A panel DMA is still exposed, add
    # pipeline_mode=pl.Buffered(3) on the A BlockSpec only.

    # Pass 1: Y = A @ X  (bf16 intermediate; halves the Y HBM round-trip).
    y = pl.pallas_call(
        _pass1_kernel,
        out_shape=jax.ShapeDtypeStruct((n_pad, d_pad), jnp.bfloat16),
        grid=grid,
        in_specs=[
            pl.BlockSpec((tm, n_pad), lambda i: (i, 0)),          # A row panel
            pl.BlockSpec((n_pad, d_pad), lambda i: (0, 0)),       # X slab (resident)
        ],
        out_specs=pl.BlockSpec((tm, d_pad), lambda i: (i, 0)),
        compiler_params=cp,
        cost_estimate=pl.CostEstimate(
            flops=matmul_flops, transcendentals=0,
            bytes_accessed=a_bytes + n_pad * d_pad * 4 + n_pad * d_pad * 2),
    )(a_bf16, x_p)

    # Pass 2: Z = sigmoid(alpha) * (A @ Y) - X.
    z = pl.pallas_call(
        _pass2_kernel,
        out_shape=jax.ShapeDtypeStruct((n_pad, d_pad), out_dtype),
        grid=grid,
        in_specs=[
            pl.BlockSpec((tm, n_pad), lambda i: (i, 0)),          # A row panel
            pl.BlockSpec((n_pad, d_pad), lambda i: (0, 0)),       # Y slab (resident)
            pl.BlockSpec((tm, 1), lambda i: (i, 0)),              # alpha column
            pl.BlockSpec((tm, d_pad), lambda i: (i, 0)),          # X row block (f32)
        ],
        out_specs=pl.BlockSpec((tm, d_pad), lambda i: (i, 0)),
        compiler_params=cp,
        cost_estimate=pl.CostEstimate(
            flops=matmul_flops + 2 * n_pad * d_pad,
            transcendentals=n_pad,
            bytes_accessed=a_bytes + n_pad * d_pad * 2 + n_pad * 4
            + n_pad * d_pad * 4 + n_pad * d_pad * 4),
    )(a_bf16, y, alpha2d, x_p)

    return z[:N, :D]


def odefunc_reference(adj, alpha, x):
    """Pure-JAX f32 reference matching the PyTorch forward exactly."""
    alph = jax.nn.sigmoid(alpha)[:, None]
    ax = adj @ x
    ax = alph * (adj @ ax)
    return ax - x


if __name__ == "__main__":
    # Small deterministic shapes: N graph nodes, latent_dim features.
    N = 64           # number of nodes (rows/cols of adjacency)
    latent_dim = 32  # feature dimension of x

    key = jax.random.PRNGKey(0)
    k_adj, k_x = jax.random.split(key)

    # Deterministic synthetic row-normalized adjacency (dense stand-in for sparse g).
    adj_raw = jax.random.uniform(k_adj, (N, N), dtype=jnp.float32)
    adj = adj_raw / jnp.sum(adj_raw, axis=1, keepdims=True)

    # alpha_train = 0.9 * ones(N), exactly as in __init__.
    alpha = 0.9 * jnp.ones((N,), dtype=jnp.float32)

    x = jax.random.normal(k_x, (N, latent_dim), dtype=jnp.float32)

    # Hoisted once-per-solve preparation (pad + bf16 cast of A, alpha reshape).
    prepared = prepare_odefunc(adj, alpha, latent_dim)

    f = odefunc_forward(prepared, x)
    f = jax.block_until_ready(f)

    f_ref = odefunc_reference(adj, alpha, x)
    assert f.shape == (N, latent_dim)
    # A is applied twice in bf16 on the MXU (f32 accumulation, exact f32 "-x"
    # epilogue) -> tolerance loosened vs the pure-f32 reference.
    assert jnp.allclose(f, f_ref, atol=1e-2, rtol=1e-2), "mismatch vs reference"

    print("KERNEL_OK")
</pallas_src>

<mosaic_0001>
module attributes {stable_mosaic.version = 11 : i64} {
  func.func @_fused_kernel(%arg0: i32, %arg1: memref<128x128xbf16, #tpu.memory_space<vmem>>, %arg2: memref<128x128xf32, #tpu.memory_space<vmem>>, %arg3: memref<128x1xf32, #tpu.memory_space<vmem>>, %arg4: memref<128x128xf32, #tpu.memory_space<vmem>>) attributes {dimension_semantics = [#tpu.dimension_semantics<arbitrary>], iteration_bounds = array<i64: 1>, scalar_prefetch = 0 : i64, scratch_operands = 0 : i64, tpu.core_type = #tpu.core_type<tc>, window_params = [{pipeline_mode = #tpu.pipeline_mode<synchronous>, transform_indices = @transform_0, window_bounds = array<i64: 128, 128>}, {pipeline_mode = #tpu.pipeline_mode<synchronous>, transform_indices = @transform_1, window_bounds = array<i64: 128, 128>}, {pipeline_mode = #tpu.pipeline_mode<synchronous>, transform_indices = @transform_2, window_bounds = array<i64: 128, 1>}, {pipeline_mode = #tpu.pipeline_mode<synchronous>, transform_indices = @transform_3, window_bounds = array<i64: 128, 128>}]} {
    %c0 = arith.constant 0 : index
    %c0_0 = arith.constant 0 : index
    %0 = vector.load %arg1[%c0, %c0_0] : memref<128x128xbf16, #tpu.memory_space<vmem>>, vector<128x128xbf16>
    %c0_1 = arith.constant 0 : index
    %c0_2 = arith.constant 0 : index
    %1 = vector.load %arg2[%c0_1, %c0_2] : memref<128x128xf32, #tpu.memory_space<vmem>>, vector<128x128xf32>
    %2 = arith.truncf %1 : vector<128x128xf32> to vector<128x128xbf16>
    %cst = arith.constant dense<0.000000e+00> : vector<128x128xf32>
    %3 = tpu.matmul %0, %2, %cst {dimension_numbers = #tpu.dot_dimension_numbers<[1], [0], [0], [1], [0, 0, 1, 1], [], []>} : vector<128x128xbf16>, vector<128x128xbf16>, vector<128x128xf32> -> vector<128x128xf32>
    %4 = arith.truncf %3 : vector<128x128xf32> to vector<128x128xbf16>
    %cst_3 = arith.constant dense<0.000000e+00> : vector<128x128xf32>
    %5 = tpu.matmul %0, %4, %cst_3 {dimension_numbers = #tpu.dot_dimension_numbers<[1], [0], [0], [1], [0, 0, 1, 1], [], []>} : vector<128x128xbf16>, vector<128x128xbf16>, vector<128x128xf32> -> vector<128x128xf32>
    %c0_4 = arith.constant 0 : index
    %c0_5 = arith.constant 0 : index
    %6 = vector.load %arg3[%c0_4, %c0_5] : memref<128x1xf32, #tpu.memory_space<vmem>>, vector<128x1xf32>
    %7 = arith.negf %6 : vector<128x1xf32>
    %8 = math.exp %7 : vector<128x1xf32>
    %cst_6 = arith.constant 1.000000e+00 : f32
    %9 = vector.broadcast %cst_6 : f32 to vector<128x1xf32>
    %10 = arith.addf %9, %8 : vector<128x1xf32>
    %11 = arith.divf %9, %10 : vector<128x1xf32>
    %12 = vector.broadcast %11 : vector<128x1xf32> to vector<128x128xf32>
    %13 = arith.mulf %12, %5 : vector<128x128xf32>
    %14 = arith.subf %13, %1 : vector<128x128xf32>
    %c0_7 = arith.constant 0 : index
    %c0_8 = arith.constant 0 : index
    %15 = vector.load %arg4[%c0_7, %c0_8] : memref<128x128xf32, #tpu.memory_space<vmem>>, vector<128x128xf32>
    tpu.vector_store %arg4[%c0_7, %c0_8], %14 {strides = array<i32>} : memref<128x128xf32, #tpu.memory_space<vmem>>, vector<128x128xf32>,
    return
  }
  func.func @transform_0(%arg0: i32) -> (i32, i32) {
    %c0_i32 = arith.constant 0 : i32
    %c0_i32_0 = arith.constant 0 : i32
    %c0_i32_1 = arith.constant 0 : i32
    return %c0_i32, %c0_i32_0 : i32, i32
  }
  func.func @transform_1(%arg0: i32) -> (i32, i32) {
    %c0_i32 = arith.constant 0 : i32
    %c0_i32_0 = arith.constant 0 : i32
    %c0_i32_1 = arith.constant 0 : i32
    return %c0_i32, %c0_i32_0 : i32, i32
  }
  func.func @transform_2(%arg0: i32) -> (i32, i32) {
    %c0_i32 = arith.constant 0 : i32
    %c0_i32_0 = arith.constant 0 : i32
    %c0_i32_1 = arith.constant 0 : i32
    return %c0_i32, %c0_i32_0 : i32, i32
  }
  func.func @transform_3(%arg0: i32) -> (i32, i32) {
    %c0_i32 = arith.constant 0 : i32
    %c0_i32_0 = arith.constant 0 : i32
    %c0_i32_1 = arith.constant 0 : i32
    return %c0_i32, %c0_i32_0 : i32, i32
  }
}

</mosaic_0001>

<llo_original>
// kernel: tpu_custom_call.1
$region0: #{tpu_custom_call.1}
  #allocation0 [shape = 'u32[]', space=smem, size = 0x4, offset = 0x4, fixed_abs, tag = 'smem constant byte address 0x4 - core index']
  #allocation1 [shape = 'u32[144,128]{1,0:T(1,128)}', space=vmem, size = 0x12000, scoped, tag = 'internal scratch']
  %s0 = inlined_call_operand.hbm [shape: bf16[128,128], index: 0, kind: input, shape index: {}]
  %s1 = inlined_call_operand.vmem [shape: f32[128,128], index: 1, kind: input, shape index: {}]
  %s2 = inlined_call_operand.vmem [shape: f32[128,1], index: 2, kind: input, shape index: {}]
  %s3 = inlined_call_operand.hbm [shape: f32[128,128], index: 3, kind: output, shape index: {}]
  %s4 = sld [smem:[#allocation0]]
  $region26: #{tpu_custom_call.1} parent=0
    _
  %s6 = ssub.s32 1, %s4
  %s7 = scalar_select 0, %s6, %s4
  $region1: #{tpu_custom_call.1} parent=0
    #allocation2 [shape = 'u8[32768]{0}', space=vmem, size = 0x8000, scoped, tag = 'input window, operand 0, single buffered']
    #allocation3 [shape = 's32[1]{0}', space=sflag, size = 0x4, scoped, tag = 'scoped memory for tpu_custom_call.1']
    #allocation4 [shape = 's32[1]{0}', space=sflag, size = 0x4, scoped, tag = 'scoped memory for tpu_custom_call.1']
    #allocation5 [shape = 'u8[65536]{0}', space=vmem, size = 0x10000, scoped, tag = 'output window, operand 0, single buffered']
    %8 = vsyncpa [#allocation3], 0
    %9 = vsyncpa [#allocation4], 0
    // Predicated region
    $region2: #{tpu_custom_call.1} parent=1 // pred_check
      _
    $region3: #{tpu_custom_call.1} parent=1 // pred_check_branch
      %11 = sbr.rel (0) target = $region5
    $region4: #{tpu_custom_call.1} parent=1 // pred_region
      %s13 = ssub.s32 1024, 1024
      %14 = vsyncadd [#allocation3], %s13
      %s15 = sshll.u32 [#allocation2], 4
      %s16 = int_to_ptr.vmem [resolvable:$true] %s15
      %21 = dma.hbm_to_vmem [thread:$0]  %s0, 1024, %s16, [#allocation3], 64, 64, 4
    $region5: #{tpu_custom_call.1} parent=1 // pred_fallthru
      _
    // Predicated region
    $region6: #{tpu_custom_call.1} parent=1 // pred_check
      _
    $region7: #{tpu_custom_call.1} parent=1 // pred_check_branch
      %23 = sbr.rel (0) target = $region9
    $region8: #{tpu_custom_call.1} parent=1 // pred_region
      _
    $region9: #{tpu_custom_call.1} parent=1 // pred_fallthru
      _
    // Predicated region
    $region10: #{tpu_custom_call.1} parent=1 // pred_check
      _
    $region11: #{tpu_custom_call.1} parent=1 // pred_check_branch
      %25 = sbr.rel (0) target = $region13
    $region12: #{tpu_custom_call.1} parent=1 // pred_region
      _
    $region13: #{tpu_custom_call.1} parent=1 // pred_fallthru
      _
    // Predicated region
    $region14: #{tpu_custom_call.1} parent=1 // pred_check
      _
    $region15: #{tpu_custom_call.1} parent=1 // pred_check_branch
      %27 = sbr.rel (0) target = $region17
    $region16: #{tpu_custom_call.1} parent=1 // pred_region
      %28 = dma.done [#allocation3], 1024
    $region17: #{tpu_custom_call.1} parent=1 // pred_fallthru
      _
    %v30 = vld [vmem:[#allocation2] sm:$0xf]
    %v31 = vld [vmem:[#allocation2 + $0x4] sm:$0xf]
    %v32 = vld [vmem:[#allocation2 + $0x8] sm:$0xf]
    %v33 = vld [vmem:[#allocation2 + $0xc] sm:$0xf]
    %v34 = vld [vmem:[#allocation2 + $0x10] sm:$0xf]
    %v35 = vld [vmem:[#allocation2 + $0x14] sm:$0xf]
    %v36 = vld [vmem:[#allocation2 + $0x18] sm:$0xf]
    %v37 = vld [vmem:[#allocation2 + $0x1c] sm:$0xf]
    %v38 = vld [vmem:[#allocation2 + $0x20] sm:$0xf]
    %v39 = vld [vmem:[#allocation2 + $0x24] sm:$0xf]
    %v40 = vld [vmem:[#allocation2 + $0x28] sm:$0xf]
    %v41 = vld [vmem:[#allocation2 + $0x2c] sm:$0xf]
    %v42 = vld [vmem:[#allocation2 + $0x30] sm:$0xf]
    %v43 = vld [vmem:[#allocation2 + $0x34] sm:$0xf]
    %v44 = vld [vmem:[#allocation2 + $0x38] sm:$0xf]
    %v45 = vld [vmem:[#allocation2 + $0x3c] sm:$0xf]
    %v46 = vld [vmem:[%s1] sm:$0xff]
    %v47 = vld [vmem:[%s1 + $0x8] sm:$0xff]
    %v48 = vld [vmem:[%s1 + $0x10] sm:$0xff]
    %v49 = vld [vmem:[%s1 + $0x18] sm:$0xff]
    %v50 = vld [vmem:[%s1 + $0x20] sm:$0xff]
    %v51 = vld [vmem:[%s1 + $0x28] sm:$0xff]
    %v52 = vld [vmem:[%s1 + $0x30] sm:$0xff]
    %v53 = vld [vmem:[%s1 + $0x38] sm:$0xff]
    %v54 = vld [vmem:[%s1 + $0x40] sm:$0xff]
    %v55 = vld [vmem:[%s1 + $0x48] sm:$0xff]
    %v56 = vld [vmem:[%s1 + $0x50] sm:$0xff]
    %v57 = vld [vmem:[%s1 + $0x58] sm:$0xff]
    %v58 = vld [vmem:[%s1 + $0x60] sm:$0xff]
    %v59 = vld [vmem:[%s1 + $0x68] sm:$0xff]
    %v60 = vld [vmem:[%s1 + $0x70] sm:$0xff]
    %v61 = vld [vmem:[%s1 + $0x78] sm:$0xff]
    %v62 = vpack.c.bf16 %v47, %v46
    %v63 = vpack.c.bf16 %v49, %v48
    %v64 = vpack.c.bf16 %v51, %v50
    %v65 = vpack.c.bf16 %v53, %v52
    %v66 = vpack.c.bf16 %v55, %v54
    %v67 = vpack.c.bf16 %v57, %v56
    %v68 = vpack.c.bf16 %v59, %v58
    %v69 = vpack.c.bf16 %v61, %v60
    %v86 = vunpack.c.l.b16 %v30
    %v87 = vunpack.c.l.b16 %v31
    %v88 = vunpack.c.l.b16 %v32
    %v89 = vunpack.c.l.b16 %v33
    %v90 = vunpack.c.l.b16 %v34
    %v91 = vunpack.c.l.b16 %v35
    %v92 = vunpack.c.l.b16 %v36
    %v93 = vunpack.c.l.b16 %v37
    %v94 = vunpack.c.l.b16 %v38
    %v95 = vunpack.c.l.b16 %v39
    %v96 = vunpack.c.l.b16 %v40
    %v97 = vunpack.c.l.b16 %v41
    %v98 = vunpack.c.l.b16 %v42
    %v99 = vunpack.c.l.b16 %v43
    %v100 = vunpack.c.l.b16 %v44
    %v101 = vunpack.c.l.b16 %v45
    %v102 = vpack.c.b16 %v87, %v86
    %v103 = vpack.c.b16 %v89, %v88
    %v104 = vpack.c.b16 %v91, %v90
    %v105 = vpack.c.b16 %v93, %v92
    %v106 = vpack.c.b16 %v95, %v94
    %v107 = vpack.c.b16 %v97, %v96
    %v108 = vpack.c.b16 %v99, %v98
    %v109 = vpack.c.b16 %v101, %v100
    %118 = vmatprep.subr.bf16.mxu0 0
    %119 = vmatpush1.bf16.msra.mxu0 %v62
    %120 = vmatprep.subr.bf16.mxu0 0
    %121 = vmatpush1.bf16.msra.mxu0 %v63
    %122 = vmatprep.subr.bf16.mxu0 0
    %123 = vmatpush1.bf16.msra.mxu0 %v64
    %124 = vmatprep.subr.bf16.mxu0 0
    %125 = vmatpush1.bf16.msra.mxu0 %v65
    %126 = vmatprep.subr.bf16.mxu0 0
    %127 = vmatpush1.bf16.msra.mxu0 %v66
    %128 = vmatprep.subr.bf16.mxu0 0
    %129 = vmatpush1.bf16.msra.mxu0 %v67
    %130 = vmatprep.subr.bf16.mxu0 0
    %131 = vmatpush1.bf16.msra.mxu0 %v68
    %132 = vmatprep.subr.bf16.mxu0 0
    %133 = vmatpush1.bf16.msra.mxu0 %v69
    %134 = vmatprep.subr.bf16.mxu0 0
    %135 = vmatpush1.bf16.msra.mxu0 0
    %136 = vmatprep.subr.bf16.mxu0 0
    %137 = vmatpush1.bf16.msra.mxu0 0
    %138 = vmatprep.subr.bf16.mxu0 0
    %139 = vmatpush1.bf16.msra.mxu0 0
    %140 = vmatprep.subr.bf16.mxu0 0
    %141 = vmatpush1.bf16.msra.mxu0 0
    %142 = vmatprep.subr.bf16.mxu0 0
    %143 = vmatpush1.bf16.msra.mxu0 0
    %144 = vmatprep.subr.bf16.mxu0 0
    %145 = vmatpush1.bf16.msra.mxu0 0
    %146 = vmatprep.subr.bf16.mxu0 0
    %147 = vmatpush1.bf16.msra.mxu0 0
    %148 = vmatprep.subr.bf16.mxu0 0
    %149 = vmatpush1.bf16.msra.mxu0 0
    %150 = vmatprep.mubr.bf16.mxu0 0
    %151 = vmatmul.mubr.bf16.gmra.mrb[0].mxu0 %v102
    %v152 = vpop.f32.mrb[0].mxu0
    %v153 = vadd.f32 0.0, %v152
    %v154 = vpop.f32.mrb[0].mxu0
    %v155 = vpop.f32.mrb[0].mxu0
    %v156 = vadd.f32 0.0, %v155
    %v157 = vpop.f32.mrb[0].mxu0
    %158 = vmatprep.mubr.bf16.mxu0 0
    %159 = vmatmul.mubr.bf16.gmra.mrb[0].mxu0 %v103
    %v160 = vpop.f32.mrb[0].mxu0
    %v161 = vadd.f32 0.0, %v160
    %v162 = vpop.f32.mrb[0].mxu0
    %v163 = vpop.f32.mrb[0].mxu0
    %v164 = vadd.f32 0.0, %v163
    %v165 = vpop.f32.mrb[0].mxu0
    %166 = vmatprep.mubr.bf16.mxu0 0
    %167 = vmatmul.mubr.bf16.gmra.mrb[0].mxu0 %v104
    %v168 = vpop.f32.mrb[0].mxu0
    %v169 = vadd.f32 0.0, %v168
    %v170 = vpop.f32.mrb[0].mxu0
    %v171 = vpop.f32.mrb[0].mxu0
    %v172 = vadd.f32 0.0, %v171
    %v173 = vpop.f32.mrb[0].mxu0
    %174 = vmatprep.mubr.bf16.mxu0 0
    %175 = vmatmul.mubr.bf16.gmra.mrb[0].mxu0 %v105
    %v176 = vpop.f32.mrb[0].mxu0
    %v177 = vadd.f32 0.0, %v176
    %v178 = vpop.f32.mrb[0].mxu0
    %v179 = vpop.f32.mrb[0].mxu0
    %v180 = vadd.f32 0.0, %v179
    %v181 = vpop.f32.mrb[0].mxu0
    %182 = vmatprep.mubr.bf16.mxu0 0
    %183 = vmatmul.mubr.bf16.gmra.mrb[0].mxu0 %v106
    %v184 = vpop.f32.mrb[0].mxu0
    %v185 = vadd.f32 0.0, %v184
    %v186 = vpop.f32.mrb[0].mxu0
    %v187 = vpop.f32.mrb[0].mxu0
    %v188 = vadd.f32 0.0, %v187
    %v189 = vpop.f32.mrb[0].mxu0
    %190 = vmatprep.mubr.bf16.mxu0 0
    %191 = vmatmul.mubr.bf16.gmra.mrb[0].mxu0 %v107
    %v192 = vpop.f32.mrb[0].mxu0
    %v193 = vadd.f32 0.0, %v192
    %v194 = vpop.f32.mrb[0].mxu0
    %v195 = vpop.f32.mrb[0].mxu0
    %v196 = vadd.f32 0.0, %v195
    %v197 = vpop.f32.mrb[0].mxu0
    %198 = vmatprep.mubr.bf16.mxu0 0
    %199 = vmatmul.mubr.bf16.gmra.mrb[0].mxu0 %v108
    %v200 = vpop.f32.mrb[0].mxu0
    %v201 = vadd.f32 0.0, %v200
    %v202 = vpop.f32.mrb[0].mxu0
    %v203 = vpop.f32.mrb[0].mxu0
    %v204 = vadd.f32 0.0, %v203
    %v205 = vpop.f32.mrb[0].mxu0
    %206 = vmatprep.mubr.bf16.mxu0 0
    %207 = vmatmul.mubr.bf16.gmra.mrb[0].mxu0 %v109
    %v208 = vpop.f32.mrb[0].mxu0
    %v209 = vadd.f32 0.0, %v208
    %v210 = vpop.f32.mrb[0].mxu0
    %v211 = vpop.f32.mrb[0].mxu0
    %v212 = vadd.f32 0.0, %v211
    %v213 = vpop.f32.mrb[0].mxu0
    %214 = vdwg.mxu0
    %v215 = vpack.c.bf16 %v156, %v153
    %v216 = vpack.c.bf16 %v164, %v161
    %v217 = vpack.c.bf16 %v172, %v169
    %v218 = vpack.c.bf16 %v180, %v177
    %v219 = vpack.c.bf16 %v188, %v185
    %v220 = vpack.c.bf16 %v196, %v193
    %v221 = vpack.c.bf16 %v204, %v201
    %v222 = vpack.c.bf16 %v212, %v209
    %223 = vmatprep.subr.bf16.mxu0 0
    %224 = vmatpush1.bf16.msra.mxu0 %v215
    %225 = vmatprep.subr.bf16.mxu0 0
    %226 = vmatpush1.bf16.msra.mxu0 %v216
    %227 = vmatprep.subr.bf16.mxu0 0
    %228 = vmatpush1.bf16.msra.mxu0 %v217
    %229 = vmatprep.subr.bf16.mxu0 0
    %230 = vmatpush1.bf16.msra.mxu0 %v218
    %231 = vmatprep.subr.bf16.mxu0 0
    %232 = vmatpush1.bf16.msra.mxu0 %v219
    %233 = vmatprep.subr.bf16.mxu0 0
    %234 = vmatpush1.bf16.msra.mxu0 %v220
    %235 = vmatprep.subr.bf16.mxu0 0
    %236 = vmatpush1.bf16.msra.mxu0 %v221
    %237 = vmatprep.subr.bf16.mxu0 0
    %238 = vmatpush1.bf16.msra.mxu0 %v222
    %239 = vmatprep.subr.bf16.mxu0 0
    %240 = vmatpush1.bf16.msra.mxu0 0
    %241 = vmatprep.subr.bf16.mxu0 0
    %242 = vmatpush1.bf16.msra.mxu0 0
    %243 = vmatprep.subr.bf16.mxu0 0
    %244 = vmatpush1.bf16.msra.mxu0 0
    %245 = vmatprep.subr.bf16.mxu0 0
    %246 = vmatpush1.bf16.msra.mxu0 0
    %247 = vmatprep.subr.bf16.mxu0 0
    %248 = vmatpush1.bf16.msra.mxu0 0
    %249 = vmatprep.subr.bf16.mxu0 0
    %250 = vmatpush1.bf16.msra.mxu0 0
    %251 = vmatprep.subr.bf16.mxu0 0
    %252 = vmatpush1.bf16.msra.mxu0 0
    %253 = vmatprep.subr.bf16.mxu0 0
    %254 = vmatpush1.bf16.msra.mxu0 0
    %255 = vmatprep.mubr.bf16.mxu0 0
    %256 = vmatmul.mubr.bf16.gmra.mrb[0].mxu0 %v102
    %v257 = vpop.f32.mrb[0].mxu0
    %v258 = vadd.f32 0.0, %v257
    %v259 = vpop.f32.mrb[0].mxu0
    %v260 = vpop.f32.mrb[0].mxu0
    %v261 = vadd.f32 0.0, %v260
    %v262 = vpop.f32.mrb[0].mxu0
    %263 = vmatprep.mubr.bf16.mxu0 0
    %264 = vmatmul.mubr.bf16.gmra.mrb[0].mxu0 %v103
    %v265 = vpop.f32.mrb[0].mxu0
    %v266 = vadd.f32 0.0, %v265
    %v267 = vpop.f32.mrb[0].mxu0
    %v268 = vpop.f32.mrb[0].mxu0
    %v269 = vadd.f32 0.0, %v268
    %v270 = vpop.f32.mrb[0].mxu0
    %271 = vmatprep.mubr.bf16.mxu0 0
    %272 = vmatmul.mubr.bf16.gmra.mrb[0].mxu0 %v104
    %v273 = vpop.f32.mrb[0].mxu0
    %v274 = vadd.f32 0.0, %v273
    %v275 = vpop.f32.mrb[0].mxu0
    %v276 = vpop.f32.mrb[0].mxu0
    %v277 = vadd.f32 0.0, %v276
    %v278 = vpop.f32.mrb[0].mxu0
    %279 = vmatprep.mubr.bf16.mxu0 0
    %280 = vmatmul.mubr.bf16.gmra.mrb[0].mxu0 %v105
    %v281 = vpop.f32.mrb[0].mxu0
    %v282 = vadd.f32 0.0, %v281
    %v283 = vpop.f32.mrb[0].mxu0
    %v284 = vpop.f32.mrb[0].mxu0
    %v285 = vadd.f32 0.0, %v284
    %v286 = vpop.f32.mrb[0].mxu0
    %287 = vmatprep.mubr.bf16.mxu0 0
    %288 = vmatmul.mubr.bf16.gmra.mrb[0].mxu0 %v106
    %v289 = vpop.f32.mrb[0].mxu0
    %v290 = vadd.f32 0.0, %v289
    %v291 = vpop.f32.mrb[0].mxu0
    %v292 = vpop.f32.mrb[0].mxu0
    %v293 = vadd.f32 0.0, %v292
    %v294 = vpop.f32.mrb[0].mxu0
    %295 = vmatprep.mubr.bf16.mxu0 0
    %296 = vmatmul.mubr.bf16.gmra.mrb[0].mxu0 %v107
    %v297 = vpop.f32.mrb[0].mxu0
    %v298 = vadd.f32 0.0, %v297
    %v299 = vpop.f32.mrb[0].mxu0
    %v300 = vpop.f32.mrb[0].mxu0
    %v301 = vadd.f32 0.0, %v300
    %v302 = vpop.f32.mrb[0].mxu0
    %303 = vmatprep.mubr.bf16.mxu0 0
    %304 = vmatmul.mubr.bf16.gmra.mrb[0].mxu0 %v108
    %v305 = vpop.f32.mrb[0].mxu0
    %v306 = vadd.f32 0.0, %v305
    %v307 = vpop.f32.mrb[0].mxu0
    %v308 = vpop.f32.mrb[0].mxu0
    %v309 = vadd.f32 0.0, %v308
    %v310 = vpop.f32.mrb[0].mxu0
    %311 = vmatprep.mubr.bf16.mxu0 0
    %312 = vmatmul.mubr.bf16.gmra.mrb[0].mxu0 %v109
    %v313 = vpop.f32.mrb[0].mxu0
    %v314 = vadd.f32 0.0, %v313
    %v315 = vpop.f32.mrb[0].mxu0
    %v316 = vpop.f32.mrb[0].mxu0
    %v317 = vadd.f32 0.0, %v316
    %v318 = vpop.f32.mrb[0].mxu0
    %319 = vdwg.mxu0
    %v320 = vld [vmem:[%s2] sm:$0xff]
    %v321 = vld [vmem:[%s2 + $0x8] sm:$0xff]
    %v322 = vld [vmem:[%s2 + $0x10] sm:$0xff]
    %v323 = vld [vmem:[%s2 + $0x18] sm:$0xff]
    %v324 = vld [vmem:[%s2 + $0x20] sm:$0xff]
    %v325 = vld [vmem:[%s2 + $0x28] sm:$0xff]
    %v326 = vld [vmem:[%s2 + $0x30] sm:$0xff]
    %v327 = vld [vmem:[%s2 + $0x38] sm:$0xff]
    %v328 = vld [vmem:[%s2 + $0x40] sm:$0xff]
    %v329 = vld [vmem:[%s2 + $0x48] sm:$0xff]
    %v330 = vld [vmem:[%s2 + $0x50] sm:$0xff]
    %v331 = vld [vmem:[%s2 + $0x58] sm:$0xff]
    %v332 = vld [vmem:[%s2 + $0x60] sm:$0xff]
    %v333 = vld [vmem:[%s2 + $0x68] sm:$0xff]
    %v334 = vld [vmem:[%s2 + $0x70] sm:$0xff]
    %v335 = vld [vmem:[%s2 + $0x78] sm:$0xff]
    %v336 = vxor.u32 %v320, 2147483648
    %v337 = vxor.u32 %v321, 2147483648
    %v338 = vxor.u32 %v322, 2147483648
    %v339 = vxor.u32 %v323, 2147483648
    %v340 = vxor.u32 %v324, 2147483648
    %v341 = vxor.u32 %v325, 2147483648
    %v342 = vxor.u32 %v326, 2147483648
    %v343 = vxor.u32 %v327, 2147483648
    %v344 = vxor.u32 %v328, 2147483648
    %v345 = vxor.u32 %v329, 2147483648
    %v346 = vxor.u32 %v330, 2147483648
    %v347 = vxor.u32 %v331, 2147483648
    %v348 = vxor.u32 %v332, 2147483648
    %v349 = vxor.u32 %v333, 2147483648
    %v350 = vxor.u32 %v334, 2147483648
    %v351 = vxor.u32 %v335, 2147483648
    %v352 = vmul.f32 %v336, 1.442695
    %v353 = vpow.pop %v352
    %v354 = vmul.f32 %v337, 1.442695
    %v355 = vpow.pop %v354
    %v356 = vmul.f32 %v338, 1.442695
    %v357 = vpow.pop %v356
    %v358 = vmul.f32 %v339, 1.442695
    %v359 = vpow.pop %v358
    %v360 = vmul.f32 %v340, 1.442695
    %v361 = vpow.pop %v360
    %v362 = vmul.f32 %v341, 1.442695
    %v363 = vpow.pop %v362
    %v364 = vmul.f32 %v342, 1.442695
    %v365 = vpow.pop %v364
    %v366 = vmul.f32 %v343, 1.442695
    %v367 = vpow.pop %v366
    %v368 = vmul.f32 %v344, 1.442695
    %v369 = vpow.pop %v368
    %v370 = vmul.f32 %v345, 1.442695
    %v371 = vpow.pop %v370
    %v372 = vmul.f32 %v346, 1.442695
    %v373 = vpow.pop %v372
    %v374 = vmul.f32 %v347, 1.442695
    %v375 = vpow.pop %v374
    %v376 = vmul.f32 %v348, 1.442695
    %v377 = vpow.pop %v376
    %v378 = vmul.f32 %v349, 1.442695
    %v379 = vpow.pop %v378
    %v380 = vmul.f32 %v350, 1.442695
    %v381 = vpow.pop %v380
    %v382 = vmul.f32 %v351, 1.442695
    %v383 = vpow.pop %v382
    %v384 = vadd.f32 %v353, 1.0
    %v385 = vadd.f32 %v355, 1.0
    %v386 = vadd.f32 %v357, 1.0
    %v387 = vadd.f32 %v359, 1.0
    %v388 = vadd.f32 %v361, 1.0
    %v389 = vadd.f32 %v363, 1.0
    %v390 = vadd.f32 %v365, 1.0
    %v391 = vadd.f32 %v367, 1.0
    %v392 = vadd.f32 %v369, 1.0
    %v393 = vadd.f32 %v371, 1.0
    %v394 = vadd.f32 %v373, 1.0
    %v395 = vadd.f32 %v375, 1.0
    %v396 = vadd.f32 %v377, 1.0
    %v397 = vadd.f32 %v379, 1.0
    %v398 = vadd.f32 %v381, 1.0
    %v399 = vadd.f32 %v383, 1.0
    %v400 = vrcp.pop %v384
    %v401 = vmul.f32 1.0, %v400
    %v402 = vrcp.pop %v385
    %v403 = vmul.f32 1.0, %v402
    %v404 = vrcp.pop %v386
    %v405 = vmul.f32 1.0, %v404
    %v406 = vrcp.pop %v387
    %v407 = vmul.f32 1.0, %v406
    %v408 = vrcp.pop %v388
    %v409 = vmul.f32 1.0, %v408
    %v410 = vrcp.pop %v389
    %v411 = vmul.f32 1.0, %v410
    %v412 = vrcp.pop %v390
    %v413 = vmul.f32 1.0, %v412
    %v414 = vrcp.pop %v391
    %v415 = vmul.f32 1.0, %v414
    %v416 = vrcp.pop %v392
    %v417 = vmul.f32 1.0, %v416
    %v418 = vrcp.pop %v393
    %v419 = vmul.f32 1.0, %v418
    %v420 = vrcp.pop %v394
    %v421 = vmul.f32 1.0, %v420
    %v422 = vrcp.pop %v395
    %v423 = vmul.f32 1.0, %v422
    %v424 = vrcp.pop %v396
    %v425 = vmul.f32 1.0, %v424
    %v426 = vrcp.pop %v397
    %v427 = vmul.f32 1.0, %v426
    %v428 = vrcp.pop %v398
    %v429 = vmul.f32 1.0, %v428
    %v430 = vrcp.pop %v399
    %v431 = vmul.f32 1.0, %v430
    %433 = vset.pattern.permute.xlu0 0
    %434 = vperm.xlu0 %433, %v401
    %v435 = vpop.permute.xlu0 %434
    %438 = vset.pattern.permute.xlu0 0
    %439 = vperm.xlu0 %438, %v403
    %v440 = vpop.permute.xlu0 %439
    %443 = vset.pattern.permute.xlu0 0
    %444 = vperm.xlu0 %443, %v405
    %v445 = vpop.permute.xlu0 %444
    %448 = vset.pattern.permute.xlu0 0
    %449 = vperm.xlu0 %448, %v407
    %v450 = vpop.permute.xlu0 %449
    %453 = vset.pattern.permute.xlu0 0
    %454 = vperm.xlu0 %453, %v409
    %v455 = vpop.permute.xlu0 %454
    %458 = vset.pattern.permute.xlu0 0
    %459 = vperm.xlu0 %458, %v411
    %v460 = vpop.permute.xlu0 %459
    %463 = vset.pattern.permute.xlu0 0
    %464 = vperm.xlu0 %463, %v413
    %v465 = vpop.permute.xlu0 %464
    %468 = vset.pattern.permute.xlu0 0
    %469 = vperm.xlu0 %468, %v415
    %v470 = vpop.permute.xlu0 %469
    %473 = vset.pattern.permute.xlu0 0
    %474 = vperm.xlu0 %473, %v417
    %v475 = vpop.permute.xlu0 %474
    %478 = vset.pattern.permute.xlu0 0
    %479 = vperm.xlu0 %478, %v419
    %v480 = vpop.permute.xlu0 %479
    %483 = vset.pattern.permute.xlu0 0
    %484 = vperm.xlu0 %483, %v421
    %v485 = vpop.permute.xlu0 %484
    %488 = vset.pattern.permute.xlu0 0
    %489 = vperm.xlu0 %488, %v423
    %v490 = vpop.permute.xlu0 %489
    %493 = vset.pattern.permute.xlu0 0
    %494 = vperm.xlu0 %493, %v425
    %v495 = vpop.permute.xlu0 %494
    %498 = vset.pattern.permute.xlu0 0
    %499 = vperm.xlu0 %498, %v427
    %v500 = vpop.permute.xlu0 %499
    %503 = vset.pattern.permute.xlu0 0
    %504 = vperm.xlu0 %503, %v429
    %v505 = vpop.permute.xlu0 %504
    %508 = vset.pattern.permute.xlu0 0
    %509 = vperm.xlu0 %508, %v431
    %v510 = vpop.permute.xlu0 %509
    %v512 = vmul.f32 %v435, %v258
    %v513 = vmul.f32 %v440, %v261
    %v514 = vmul.f32 %v445, %v266
    %v515 = vmul.f32 %v450, %v269
    %v516 = vmul.f32 %v455, %v274
    %v517 = vmul.f32 %v460, %v277
    %v518 = vmul.f32 %v465, %v282
    %v519 = vmul.f32 %v470, %v285
    %v520 = vmul.f32 %v475, %v290
    %v521 = vmul.f32 %v480, %v293
    %v522 = vmul.f32 %v485, %v298
    %v523 = vmul.f32 %v490, %v301
    %v524 = vmul.f32 %v495, %v306
    %v525 = vmul.f32 %v500, %v309
    %v526 = vmul.f32 %v505, %v314
    %v527 = vmul.f32 %v510, %v317
    %v528 = vsub.f32 %v512, %v46
    %v529 = vsub.f32 %v513, %v47
    %v530 = vsub.f32 %v514, %v48
    %v531 = vsub.f32 %v515, %v49
    %v532 = vsub.f32 %v516, %v50
    %v533 = vsub.f32 %v517, %v51
    %v534 = vsub.f32 %v518, %v52
    %v535 = vsub.f32 %v519, %v53
    %v536 = vsub.f32 %v520, %v54
    %v537 = vsub.f32 %v521, %v55
    %v538 = vsub.f32 %v522, %v56
    %v539 = vsub.f32 %v523, %v57
    %v540 = vsub.f32 %v524, %v58
    %v541 = vsub.f32 %v525, %v59
    %v542 = vsub.f32 %v526, %v60
    %v543 = vsub.f32 %v527, %v61
    %544 = vst [vmem:[#allocation5] sm:$0xff] %v528
    %545 = vst [vmem:[#allocation5 + $0x8] sm:$0xff] %v529
    %546 = vst [vmem:[#allocation5 + $0x10] sm:$0xff] %v530
    %547 = vst [vmem:[#allocation5 + $0x18] sm:$0xff] %v531
    %548 = vst [vmem:[#allocation5 + $0x20] sm:$0xff] %v532
    %549 = vst [vmem:[#allocation5 + $0x28] sm:$0xff] %v533
    %550 = vst [vmem:[#allocation5 + $0x30] sm:$0xff] %v534
    %551 = vst [vmem:[#allocation5 + $0x38] sm:$0xff] %v535
    %552 = vst [vmem:[#allocation5 + $0x40] sm:$0xff] %v536
    %553 = vst [vmem:[#allocation5 + $0x48] sm:$0xff] %v537
    %554 = vst [vmem:[#allocation5 + $0x50] sm:$0xff] %v538
    %555 = vst [vmem:[#allocation5 + $0x58] sm:$0xff] %v539
    %556 = vst [vmem:[#allocation5 + $0x60] sm:$0xff] %v540
    %557 = vst [vmem:[#allocation5 + $0x68] sm:$0xff] %v541
    %558 = vst [vmem:[#allocation5 + $0x70] sm:$0xff] %v542
    %559 = vst [vmem:[#allocation5 + $0x78] sm:$0xff] %v543
    // Predicated region
    $region18: #{tpu_custom_call.1} parent=1 // pred_check
      _
    $region19: #{tpu_custom_call.1} parent=1 // pred_check_branch
      %561 = sbr.rel (0) target = $region21
    $region20: #{tpu_custom_call.1} parent=1 // pred_region
      %s563 = ssub.s32 2048, 2048
      %564 = vsyncadd [#allocation4], %s563
      %s565 = sshll.u32 [#allocation5], 4
      %s566 = int_to_ptr.vmem [resolvable:$true] %s565
      %571 = dma.vmem_to_hbm [thread:$0]  %s566, 2048, %s3, [#allocation4], 128, 128, 8
    $region21: #{tpu_custom_call.1} parent=1 // pred_fallthru
      _
    // Predicated region
    $region22: #{tpu_custom_call.1} parent=1 // pred_check
      _
    $region23: #{tpu_custom_call.1} parent=1 // pred_check_branch
      %573 = sbr.rel (0) target = $region25
    $region24: #{tpu_custom_call.1} parent=1 // pred_region
      %574 = dma.done [#allocation4], 2048
    $region25: #{tpu_custom_call.1} parent=1 // pred_fallthru
      _
    %575 = vsyncpa [#allocation3], 1
    %576 = vsyncpa [#allocation4], 1

</llo_original>
